<compile_context>
chip_gen: v7x
topology: tpu7x:2x2x1
jax: 0.10.0
libtpu: 0.0.40
codegen_flags: <defaults>
</compile_context>

<pallas_src>
import functools

import jax
import jax.numpy as jnp
from jax.experimental import pallas as pl
from jax.experimental.pallas import tpu as pltpu

LANE = 128                       # TPU lane width: pad class dim for unmasked vst
SUBLANE = 8                      # f32 sublane granularity for the batch tile
TB_MAX = 1024                    # max batch-tile rows (fits v7x's 64 MiB VMEM)
VMEM_LIMIT = 40 * 1024 * 1024    # scoped VMEM budget, safe on v5e/v6e/v7x


def _round_up(x, m):
    return ((x + m - 1) // m) * m


def _tensorcores_per_chip():
    """Best-effort detection of v7x (2 TensorCores per chip). Falls back to 1."""
    try:
        kind = jax.devices()[0].device_kind.lower()
    except Exception:
        return 1
    return 2 if "v7" in kind else 1


def linear_kernel(x_ref, w_ref, b_ref, o_ref):
    # x_ref: (TB, F) feature tile, w_ref: (F, Cp) resident weight,
    # b_ref: (1, Cp) resident bias, o_ref: (TB, Cp) lane-dense output tile.
    x = x_ref[...]
    if x.dtype != w_ref.dtype:
        # In-kernel cast rides the VPU under the DMA -- no extra HBM pass.
        x = x.astype(w_ref.dtype)
    acc = jnp.dot(x, w_ref[...], preferred_element_type=jnp.float32)
    o_ref[...] = (acc + b_ref[...]).astype(o_ref.dtype)


def prepare_classifier_params(weight, bias, compute_dtype=jnp.float32):
    """One-time parameter prep (do NOT redo per forward call).

    weight: (num_classes, feat_dim) as in nn.Linear; bias: (num_classes,).
    Returns (w_t, b_p): weight transposed to contraction-major (F, Cp), class
    axis zero-padded to a multiple of 128 lanes, bias as (1, Cp) f32.
    Pass compute_dtype=jnp.bfloat16 to halve weight HBM traffic (features are
    then cast to bf16 inside the kernel; accumulation stays f32 on the MXU).
    """
    C, F = weight.shape
    Cp = _round_up(max(C, LANE), LANE)
    w_t = jnp.zeros((F, Cp), dtype=compute_dtype).at[:, :C].set(
        weight.T.astype(compute_dtype))
    b_p = jnp.zeros((1, Cp), dtype=jnp.float32).at[:, :C].set(
        bias.astype(jnp.float32))
    return w_t, b_p


@functools.partial(jax.jit, static_argnames=("num_classes",))
def linear_classifier_fwd(features, w_t, b_p, *, num_classes):
    """features: (B, feat_dim); w_t/b_p: pre-transposed/padded params."""
    B, F = features.shape
    Cp = w_t.shape[1]

    # ---- batch-tile selection (trace-time Python; B is static) -------------
    n_steps = max(1, pl.cdiv(B, TB_MAX))
    if _tensorcores_per_chip() >= 2 and B > 256:
        n_steps = max(n_steps, 2)            # give v7x >= 2 parallel grid steps
    TB = _round_up(pl.cdiv(B, n_steps), SUBLANE)
    Bp = n_steps * TB                        # padding <= 8*n_steps - 1 rows

    x = features                             # keep native dtype (no wrapper cast)
    if Bp != B:
        x = jnp.pad(x, ((0, Bp - B), (0, 0)))

    x_isz = jnp.dtype(x.dtype).itemsize
    w_isz = jnp.dtype(w_t.dtype).itemsize
    cost = pl.CostEstimate(
        flops=2 * Bp * F * Cp,
        transcendentals=0,
        bytes_accessed=(Bp * F * x_isz       # features
                        + F * Cp * w_isz     # weight (resident)
                        + Cp * 4             # bias
                        + Bp * Cp * 4),      # output
    )

    out = pl.pallas_call(
        linear_kernel,
        out_shape=jax.ShapeDtypeStruct((Bp, Cp), jnp.float32),
        grid=(n_steps,),
        in_specs=[
            pl.BlockSpec((TB, F), lambda i: (i, 0)),   # features: tiled over batch
            pl.BlockSpec((F, Cp), lambda i: (0, 0)),   # weight: resident
            pl.BlockSpec((1, Cp), lambda i: (0, 0)),   # bias: resident
        ],
        out_specs=pl.BlockSpec((TB, Cp), lambda i: (i, 0)),
        compiler_params=pltpu.CompilerParams(
            dimension_semantics=("parallel",),         # shard batch steps across TCs
            vmem_limit_bytes=VMEM_LIMIT,
        ),
        cost_estimate=cost,
    )(x, w_t, b_p)

    # Drop batch padding and the zero-padded class columns.
    return out[:B, :num_classes]


if __name__ == "__main__":
    # LinearClassifier(name='resnet50', num_classes=10) -> fc: Linear(2048, 10)
    feat_dim = 2048
    num_classes = 10
    batch = 2

    key = jax.random.PRNGKey(0)
    k_x, k_w, k_b = jax.random.split(key, 3)

    features = jax.random.normal(k_x, (batch, feat_dim), dtype=jnp.float32)
    # Deterministic synthetic params (shapes match nn.Linear(feat_dim, num_classes)):
    bound = 1.0 / (feat_dim ** 0.5)
    weight = jax.random.uniform(k_w, (num_classes, feat_dim),
                                minval=-bound, maxval=bound, dtype=jnp.float32)
    bias = jax.random.uniform(k_b, (num_classes,),
                              minval=-bound, maxval=bound, dtype=jnp.float32)

    # One-time parameter prep (transpose + lane padding), then the forward pass.
    w_t, b_p = prepare_classifier_params(weight, bias)
    out = linear_classifier_fwd(features, w_t, b_p, num_classes=num_classes)
    out = jax.block_until_ready(out)

    # Sanity check against the plain-JAX reference.
    ref = features @ weight.T + bias
    assert out.shape == (batch, num_classes)
    assert jnp.allclose(out, ref, atol=1e-4, rtol=1e-4)

    print("KERNEL_OK")
</pallas_src>

<mosaic_0001>
module attributes {stable_mosaic.version = 11 : i64} {
  func.func @linear_kernel(%arg0: i32, %arg1: memref<8x2048xf32, #tpu.memory_space<vmem>>, %arg2: memref<2048x128xf32, #tpu.memory_space<vmem>>, %arg3: memref<1x128xf32, #tpu.memory_space<vmem>>, %arg4: memref<8x128xf32, #tpu.memory_space<vmem>>) attributes {dimension_semantics = [#tpu.dimension_semantics<parallel>], iteration_bounds = array<i64: 1>, scalar_prefetch = 0 : i64, scratch_operands = 0 : i64, tpu.core_type = #tpu.core_type<tc>, window_params = [{transform_indices = @transform_0, window_bounds = array<i64: 8, 2048>}, {pipeline_mode = #tpu.pipeline_mode<synchronous>, transform_indices = @transform_1, window_bounds = array<i64: 2048, 128>}, {pipeline_mode = #tpu.pipeline_mode<synchronous>, transform_indices = @transform_2, window_bounds = array<i64: 1, 128>}, {transform_indices = @transform_3, window_bounds = array<i64: 8, 128>}]} {
    %c0 = arith.constant 0 : index
    %c0_0 = arith.constant 0 : index
    %0 = vector.load %arg1[%c0, %c0_0] : memref<8x2048xf32, #tpu.memory_space<vmem>>, vector<8x2048xf32>
    %c0_1 = arith.constant 0 : index
    %c0_2 = arith.constant 0 : index
    %1 = vector.load %arg2[%c0_1, %c0_2] : memref<2048x128xf32, #tpu.memory_space<vmem>>, vector<2048x128xf32>
    %cst = arith.constant dense<0.000000e+00> : vector<8x128xf32>
    %2 = tpu.matmul %0, %1, %cst {dimension_numbers = #tpu.dot_dimension_numbers<[1], [0], [0], [1], [0, 0, 1, 1], [], []>} : vector<8x2048xf32>, vector<2048x128xf32>, vector<8x128xf32> -> vector<8x128xf32>
    %c0_3 = arith.constant 0 : index
    %c0_4 = arith.constant 0 : index
    %3 = vector.load %arg3[%c0_3, %c0_4] : memref<1x128xf32, #tpu.memory_space<vmem>>, vector<1x128xf32>
    %4 = vector.broadcast %3 : vector<1x128xf32> to vector<8x128xf32>
    %5 = arith.addf %2, %4 : vector<8x128xf32>
    %c0_5 = arith.constant 0 : index
    %c0_6 = arith.constant 0 : index
    %6 = vector.load %arg4[%c0_5, %c0_6] : memref<8x128xf32, #tpu.memory_space<vmem>>, vector<8x128xf32>
    tpu.vector_store %arg4[%c0_5, %c0_6], %5 {strides = array<i32>} : memref<8x128xf32, #tpu.memory_space<vmem>>, vector<8x128xf32>,
    return
  }
  func.func @transform_0(%arg0: i32) -> (i32, i32) {
    %c0_i32 = arith.constant 0 : i32
    %c0_i32_0 = arith.constant 0 : i32
    return %arg0, %c0_i32 : i32, i32
  }
  func.func @transform_1(%arg0: i32) -> (i32, i32) {
    %c0_i32 = arith.constant 0 : i32
    %c0_i32_0 = arith.constant 0 : i32
    %c0_i32_1 = arith.constant 0 : i32
    return %c0_i32, %c0_i32_0 : i32, i32
  }
  func.func @transform_2(%arg0: i32) -> (i32, i32) {
    %c0_i32 = arith.constant 0 : i32
    %c0_i32_0 = arith.constant 0 : i32
    %c0_i32_1 = arith.constant 0 : i32
    return %c0_i32, %c0_i32_0 : i32, i32
  }
  func.func @transform_3(%arg0: i32) -> (i32, i32) {
    %c0_i32 = arith.constant 0 : i32
    %c0_i32_0 = arith.constant 0 : i32
    return %arg0, %c0_i32 : i32, i32
  }
}

</mosaic_0001>

<llo_original>
// kernel: linear_classifier_fwd.1
$region0: #{linear_classifier_fwd.1}
  #allocation0 [shape = 'u32[]', space=smem, size = 0x4, offset = 0x4, fixed_abs, tag = 'smem constant byte address 0x4 - core index']
  #allocation1 [shape = 'u32[144,128]{1,0:T(1,128)}', space=vmem, size = 0x12000, scoped, tag = 'internal scratch']
  %s0 = inlined_call_operand.vmem [shape: f32[8,2048], index: 0, kind: input, shape index: {}]
  %s1 = inlined_call_operand.hbm [shape: f32[2048,128], index: 1, kind: input, shape index: {}]
  %s2 = inlined_call_operand.vmem [shape: f32[1,128], index: 2, kind: input, shape index: {}]
  %s3 = inlined_call_operand.vmem [shape: f32[8,128], index: 3, kind: output, shape index: {}]
  %s4 = sld [smem:[#allocation0]]
  $region26: #{linear_classifier_fwd.1} parent=0
    _
  %s6 = ssub.s32 1, %s4
  %s7 = scalar_select 0, %s6, %s4
  $region1: #{linear_classifier_fwd.1} parent=0
    #allocation2 [shape = 'u8[1048576]{0}', space=vmem, size = 0x100000, scoped, tag = 'input window, operand 1, single buffered']
    #allocation3 [shape = 's32[1]{0}', space=sflag, size = 0x4, scoped, tag = 'scoped memory for linear_classifier_fwd.1']
    %8 = vsyncpa [#allocation3], 0
    // Predicated region
    $region2: #{linear_classifier_fwd.1} parent=1 // pred_check
      _
    $region3: #{linear_classifier_fwd.1} parent=1 // pred_check_branch
      %10 = sbr.rel (0) target = $region5
    $region4: #{linear_classifier_fwd.1} parent=1 // pred_region
      _
    $region5: #{linear_classifier_fwd.1} parent=1 // pred_fallthru
      _
    // Predicated region
    $region6: #{linear_classifier_fwd.1} parent=1 // pred_check
      _
    $region7: #{linear_classifier_fwd.1} parent=1 // pred_check_branch
      %12 = sbr.rel (0) target = $region9
    $region8: #{linear_classifier_fwd.1} parent=1 // pred_region
      %s14 = ssub.s32 32768, 32768
      %15 = vsyncadd [#allocation3], %s14
      %s16 = sshll.u32 [#allocation2], 4
      %s17 = int_to_ptr.vmem [resolvable:$true] %s16
      %22 = dma.hbm_to_vmem [thread:$0]  %s1, 32768, %s17, [#allocation3], 128, 128, 8
    $region9: #{linear_classifier_fwd.1} parent=1 // pred_fallthru
      _
    // Predicated region
    $region10: #{linear_classifier_fwd.1} parent=1 // pred_check
      _
    $region11: #{linear_classifier_fwd.1} parent=1 // pred_check_branch
      %24 = sbr.rel (0) target = $region13
    $region12: #{linear_classifier_fwd.1} parent=1 // pred_region
      _
    $region13: #{linear_classifier_fwd.1} parent=1 // pred_fallthru
      _
    // Predicated region
    $region14: #{linear_classifier_fwd.1} parent=1 // pred_check
      _
    $region15: #{linear_classifier_fwd.1} parent=1 // pred_check_branch
      %26 = sbr.rel (0) target = $region17
    $region16: #{linear_classifier_fwd.1} parent=1 // pred_region
      %27 = dma.done [#allocation3], 32768
    $region17: #{linear_classifier_fwd.1} parent=1 // pred_fallthru
      _
    %v28 = vld [vmem:[%s0] sm:$0xff]
    %v29 = vld [vmem:[%s0 + $0x8] sm:$0xff]
    %v30 = vld [vmem:[%s0 + $0x10] sm:$0xff]
    %v31 = vld [vmem:[%s0 + $0x18] sm:$0xff]
    %v32 = vld [vmem:[%s0 + $0x20] sm:$0xff]
    %v33 = vld [vmem:[%s0 + $0x28] sm:$0xff]
    %v34 = vld [vmem:[%s0 + $0x30] sm:$0xff]
    %v35 = vld [vmem:[%s0 + $0x38] sm:$0xff]
    %v36 = vld [vmem:[%s0 + $0x40] sm:$0xff]
    %v37 = vld [vmem:[%s0 + $0x48] sm:$0xff]
    %v38 = vld [vmem:[%s0 + $0x50] sm:$0xff]
    %v39 = vld [vmem:[%s0 + $0x58] sm:$0xff]
    %v40 = vld [vmem:[%s0 + $0x60] sm:$0xff]
    %v41 = vld [vmem:[%s0 + $0x68] sm:$0xff]
    %v42 = vld [vmem:[%s0 + $0x70] sm:$0xff]
    %v43 = vld [vmem:[%s0 + $0x78] sm:$0xff]
    %v44 = vld [vmem:[#allocation2] sm:$0xff]
    %v45 = vld [vmem:[#allocation2 + $0x8] sm:$0xff]
    %v46 = vld [vmem:[#allocation2 + $0x10] sm:$0xff]
    %v47 = vld [vmem:[#allocation2 + $0x18] sm:$0xff]
    %v48 = vld [vmem:[#allocation2 + $0x20] sm:$0xff]
    %v49 = vld [vmem:[#allocation2 + $0x28] sm:$0xff]
    %v50 = vld [vmem:[#allocation2 + $0x30] sm:$0xff]
    %v51 = vld [vmem:[#allocation2 + $0x38] sm:$0xff]
    %v52 = vld [vmem:[#allocation2 + $0x40] sm:$0xff]
    %v53 = vld [vmem:[#allocation2 + $0x48] sm:$0xff]
    %v54 = vld [vmem:[#allocation2 + $0x50] sm:$0xff]
    %v55 = vld [vmem:[#allocation2 + $0x58] sm:$0xff]
    %v56 = vld [vmem:[#allocation2 + $0x60] sm:$0xff]
    %v57 = vld [vmem:[#allocation2 + $0x68] sm:$0xff]
    %v58 = vld [vmem:[#allocation2 + $0x70] sm:$0xff]
    %v59 = vld [vmem:[#allocation2 + $0x78] sm:$0xff]
    %v60 = vld [vmem:[#allocation2 + $0x80] sm:$0xff]
    %v61 = vld [vmem:[#allocation2 + $0x88] sm:$0xff]
    %v62 = vld [vmem:[#allocation2 + $0x90] sm:$0xff]
    %v63 = vld [vmem:[#allocation2 + $0x98] sm:$0xff]
    %v64 = vld [vmem:[#allocation2 + $0xa0] sm:$0xff]
    %v65 = vld [vmem:[#allocation2 + $0xa8] sm:$0xff]
    %v66 = vld [vmem:[#allocation2 + $0xb0] sm:$0xff]
    %v67 = vld [vmem:[#allocation2 + $0xb8] sm:$0xff]
    %v68 = vld [vmem:[#allocation2 + $0xc0] sm:$0xff]
    %v69 = vld [vmem:[#allocation2 + $0xc8] sm:$0xff]
    %v70 = vld [vmem:[#allocation2 + $0xd0] sm:$0xff]
    %v71 = vld [vmem:[#allocation2 + $0xd8] sm:$0xff]
    %v72 = vld [vmem:[#allocation2 + $0xe0] sm:$0xff]
    %v73 = vld [vmem:[#allocation2 + $0xe8] sm:$0xff]
    %v74 = vld [vmem:[#allocation2 + $0xf0] sm:$0xff]
    %v75 = vld [vmem:[#allocation2 + $0xf8] sm:$0xff]
    %v76 = vld [vmem:[#allocation2 + $0x100] sm:$0xff]
    %v77 = vld [vmem:[#allocation2 + $0x108] sm:$0xff]
    %v78 = vld [vmem:[#allocation2 + $0x110] sm:$0xff]
    %v79 = vld [vmem:[#allocation2 + $0x118] sm:$0xff]
    %v80 = vld [vmem:[#allocation2 + $0x120] sm:$0xff]
    %v81 = vld [vmem:[#allocation2 + $0x128] sm:$0xff]
    %v82 = vld [vmem:[#allocation2 + $0x130] sm:$0xff]
    %v83 = vld [vmem:[#allocation2 + $0x138] sm:$0xff]
    %v84 = vld [vmem:[#allocation2 + $0x140] sm:$0xff]
    %v85 = vld [vmem:[#allocation2 + $0x148] sm:$0xff]
    %v86 = vld [vmem:[#allocation2 + $0x150] sm:$0xff]
    %v87 = vld [vmem:[#allocation2 + $0x158] sm:$0xff]
    %v88 = vld [vmem:[#allocation2 + $0x160] sm:$0xff]
    %v89 = vld [vmem:[#allocation2 + $0x168] sm:$0xff]
    %v90 = vld [vmem:[#allocation2 + $0x170] sm:$0xff]
    %v91 = vld [vmem:[#allocation2 + $0x178] sm:$0xff]
    %v92 = vld [vmem:[#allocation2 + $0x180] sm:$0xff]
    %v93 = vld [vmem:[#allocation2 + $0x188] sm:$0xff]
    %v94 = vld [vmem:[#allocation2 + $0x190] sm:$0xff]
    %v95 = vld [vmem:[#allocation2 + $0x198] sm:$0xff]
    %v96 = vld [vmem:[#allocation2 + $0x1a0] sm:$0xff]
    %v97 = vld [vmem:[#allocation2 + $0x1a8] sm:$0xff]
    %v98 = vld [vmem:[#allocation2 + $0x1b0] sm:$0xff]
    %v99 = vld [vmem:[#allocation2 + $0x1b8] sm:$0xff]
    %v100 = vld [vmem:[#allocation2 + $0x1c0] sm:$0xff]
    %v101 = vld [vmem:[#allocation2 + $0x1c8] sm:$0xff]
    %v102 = vld [vmem:[#allocation2 + $0x1d0] sm:$0xff]
    %v103 = vld [vmem:[#allocation2 + $0x1d8] sm:$0xff]
    %v104 = vld [vmem:[#allocation2 + $0x1e0] sm:$0xff]
    %v105 = vld [vmem:[#allocation2 + $0x1e8] sm:$0xff]
    %v106 = vld [vmem:[#allocation2 + $0x1f0] sm:$0xff]
    %v107 = vld [vmem:[#allocation2 + $0x1f8] sm:$0xff]
    %v108 = vld [vmem:[#allocation2 + $0x200] sm:$0xff]
    %v109 = vld [vmem:[#allocation2 + $0x208] sm:$0xff]
    %v110 = vld [vmem:[#allocation2 + $0x210] sm:$0xff]
    %v111 = vld [vmem:[#allocation2 + $0x218] sm:$0xff]
    %v112 = vld [vmem:[#allocation2 + $0x220] sm:$0xff]
    %v113 = vld [vmem:[#allocation2 + $0x228] sm:$0xff]
    %v114 = vld [vmem:[#allocation2 + $0x230] sm:$0xff]
    %v115 = vld [vmem:[#allocation2 + $0x238] sm:$0xff]
    %v116 = vld [vmem:[#allocation2 + $0x240] sm:$0xff]
    %v117 = vld [vmem:[#allocation2 + $0x248] sm:$0xff]
    %v118 = vld [vmem:[#allocation2 + $0x250] sm:$0xff]
    %v119 = vld [vmem:[#allocation2 + $0x258] sm:$0xff]
    %v120 = vld [vmem:[#allocation2 + $0x260] sm:$0xff]
    %v121 = vld [vmem:[#allocation2 + $0x268] sm:$0xff]
    %v122 = vld [vmem:[#allocation2 + $0x270] sm:$0xff]
    %v123 = vld [vmem:[#allocation2 + $0x278] sm:$0xff]
    %v124 = vld [vmem:[#allocation2 + $0x280] sm:$0xff]
    %v125 = vld [vmem:[#allocation2 + $0x288] sm:$0xff]
    %v126 = vld [vmem:[#allocation2 + $0x290] sm:$0xff]
    %v127 = vld [vmem:[#allocation2 + $0x298] sm:$0xff]
    %v128 = vld [vmem:[#allocation2 + $0x2a0] sm:$0xff]
    %v129 = vld [vmem:[#allocation2 + $0x2a8] sm:$0xff]
    %v130 = vld [vmem:[#allocation2 + $0x2b0] sm:$0xff]
    %v131 = vld [vmem:[#allocation2 + $0x2b8] sm:$0xff]
    %v132 = vld [vmem:[#allocation2 + $0x2c0] sm:$0xff]
    %v133 = vld [vmem:[#allocation2 + $0x2c8] sm:$0xff]
    %v134 = vld [vmem:[#allocation2 + $0x2d0] sm:$0xff]
    %v135 = vld [vmem:[#allocation2 + $0x2d8] sm:$0xff]
    %v136 = vld [vmem:[#allocation2 + $0x2e0] sm:$0xff]
    %v137 = vld [vmem:[#allocation2 + $0x2e8] sm:$0xff]
    %v138 = vld [vmem:[#allocation2 + $0x2f0] sm:$0xff]
    %v139 = vld [vmem:[#allocation2 + $0x2f8] sm:$0xff]
    %v140 = vld [vmem:[#allocation2 + $0x300] sm:$0xff]
    %v141 = vld [vmem:[#allocation2 + $0x308] sm:$0xff]
    %v142 = vld [vmem:[#allocation2 + $0x310] sm:$0xff]
    %v143 = vld [vmem:[#allocation2 + $0x318] sm:$0xff]
    %v144 = vld [vmem:[#allocation2 + $0x320] sm:$0xff]
    %v145 = vld [vmem:[#allocation2 + $0x328] sm:$0xff]
    %v146 = vld [vmem:[#allocation2 + $0x330] sm:$0xff]
    %v147 = vld [vmem:[#allocation2 + $0x338] sm:$0xff]
    %v148 = vld [vmem:[#allocation2 + $0x340] sm:$0xff]
    %v149 = vld [vmem:[#allocation2 + $0x348] sm:$0xff]
    %v150 = vld [vmem:[#allocation2 + $0x350] sm:$0xff]
    %v151 = vld [vmem:[#allocation2 + $0x358] sm:$0xff]
    %v152 = vld [vmem:[#allocation2 + $0x360] sm:$0xff]
    %v153 = vld [vmem:[#allocation2 + $0x368] sm:$0xff]
    %v154 = vld [vmem:[#allocation2 + $0x370] sm:$0xff]
    %v155 = vld [vmem:[#allocation2 + $0x378] sm:$0xff]
    %v156 = vld [vmem:[#allocation2 + $0x380] sm:$0xff]
    %v157 = vld [vmem:[#allocation2 + $0x388] sm:$0xff]
    %v158 = vld [vmem:[#allocation2 + $0x390] sm:$0xff]
    %v159 = vld [vmem:[#allocation2 + $0x398] sm:$0xff]
    %v160 = vld [vmem:[#allocation2 + $0x3a0] sm:$0xff]
    %v161 = vld [vmem:[#allocation2 + $0x3a8] sm:$0xff]
    %v162 = vld [vmem:[#allocation2 + $0x3b0] sm:$0xff]
    %v163 = vld [vmem:[#allocation2 + $0x3b8] sm:$0xff]
    %v164 = vld [vmem:[#allocation2 + $0x3c0] sm:$0xff]
    %v165 = vld [vmem:[#allocation2 + $0x3c8] sm:$0xff]
    %v166 = vld [vmem:[#allocation2 + $0x3d0] sm:$0xff]
    %v167 = vld [vmem:[#allocation2 + $0x3d8] sm:$0xff]
    %v168 = vld [vmem:[#allocation2 + $0x3e0] sm:$0xff]
    %v169 = vld [vmem:[#allocation2 + $0x3e8] sm:$0xff]
    %v170 = vld [vmem:[#allocation2 + $0x3f0] sm:$0xff]
    %v171 = vld [vmem:[#allocation2 + $0x3f8] sm:$0xff]
    %v172 = vld [vmem:[#allocation2 + $0x400] sm:$0xff]
    %v173 = vld [vmem:[#allocation2 + $0x408] sm:$0xff]
    %v174 = vld [vmem:[#allocation2 + $0x410] sm:$0xff]
    %v175 = vld [vmem:[#allocation2 + $0x418] sm:$0xff]
    %v176 = vld [vmem:[#allocation2 + $0x420] sm:$0xff]
    %v177 = vld [vmem:[#allocation2 + $0x428] sm:$0xff]
    %v178 = vld [vmem:[#allocation2 + $0x430] sm:$0xff]
    %v179 = vld [vmem:[#allocation2 + $0x438] sm:$0xff]
    %v180 = vld [vmem:[#allocation2 + $0x440] sm:$0xff]
    %v181 = vld [vmem:[#allocation2 + $0x448] sm:$0xff]
    %v182 = vld [vmem:[#allocation2 + $0x450] sm:$0xff]
    %v183 = vld [vmem:[#allocation2 + $0x458] sm:$0xff]
    %v184 = vld [vmem:[#allocation2 + $0x460] sm:$0xff]
    %v185 = vld [vmem:[#allocation2 + $0x468] sm:$0xff]
    %v186 = vld [vmem:[#allocation2 + $0x470] sm:$0xff]
    %v187 = vld [vmem:[#allocation2 + $0x478] sm:$0xff]
    %v188 = vld [vmem:[#allocation2 + $0x480] sm:$0xff]
    %v189 = vld [vmem:[#allocation2 + $0x488] sm:$0xff]
    %v190 = vld [vmem:[#allocation2 + $0x490] sm:$0xff]
    %v191 = vld [vmem:[#allocation2 + $0x498] sm:$0xff]
    %v192 = vld [vmem:[#allocation2 + $0x4a0] sm:$0xff]
    %v193 = vld [vmem:[#allocation2 + $0x4a8] sm:$0xff]
    %v194 = vld [vmem:[#allocation2 + $0x4b0] sm:$0xff]
    %v195 = vld [vmem:[#allocation2 + $0x4b8] sm:$0xff]
    %v196 = vld [vmem:[#allocation2 + $0x4c0] sm:$0xff]
    %v197 = vld [vmem:[#allocation2 + $0x4c8] sm:$0xff]
    %v198 = vld [vmem:[#allocation2 + $0x4d0] sm:$0xff]
    %v199 = vld [vmem:[#allocation2 + $0x4d8] sm:$0xff]
    %v200 = vld [vmem:[#allocation2 + $0x4e0] sm:$0xff]
    %v201 = vld [vmem:[#allocation2 + $0x4e8] sm:$0xff]
    %v202 = vld [vmem:[#allocation2 + $0x4f0] sm:$0xff]
    %v203 = vld [vmem:[#allocation2 + $0x4f8] sm:$0xff]
    %v204 = vld [vmem:[#allocation2 + $0x500] sm:$0xff]
    %v205 = vld [vmem:[#allocation2 + $0x508] sm:$0xff]
    %v206 = vld [vmem:[#allocation2 + $0x510] sm:$0xff]
    %v207 = vld [vmem:[#allocation2 + $0x518] sm:$0xff]
    %v208 = vld [vmem:[#allocation2 + $0x520] sm:$0xff]
    %v209 = vld [vmem:[#allocation2 + $0x528] sm:$0xff]
    %v210 = vld [vmem:[#allocation2 + $0x530] sm:$0xff]
    %v211 = vld [vmem:[#allocation2 + $0x538] sm:$0xff]
    %v212 = vld [vmem:[#allocation2 + $0x540] sm:$0xff]
    %v213 = vld [vmem:[#allocation2 + $0x548] sm:$0xff]
    %v214 = vld [vmem:[#allocation2 + $0x550] sm:$0xff]
    %v215 = vld [vmem:[#allocation2 + $0x558] sm:$0xff]
    %v216 = vld [vmem:[#allocation2 + $0x560] sm:$0xff]
    %v217 = vld [vmem:[#allocation2 + $0x568] sm:$0xff]
    %v218 = vld [vmem:[#allocation2 + $0x570] sm:$0xff]
    %v219 = vld [vmem:[#allocation2 + $0x578] sm:$0xff]
    %v220 = vld [vmem:[#allocation2 + $0x580] sm:$0xff]
    %v221 = vld [vmem:[#allocation2 + $0x588] sm:$0xff]
    %v222 = vld [vmem:[#allocation2 + $0x590] sm:$0xff]
    %v223 = vld [vmem:[#allocation2 + $0x598] sm:$0xff]
    %v224 = vld [vmem:[#allocation2 + $0x5a0] sm:$0xff]
    %v225 = vld [vmem:[#allocation2 + $0x5a8] sm:$0xff]
    %v226 = vld [vmem:[#allocation2 + $0x5b0] sm:$0xff]
    %v227 = vld [vmem:[#allocation2 + $0x5b8] sm:$0xff]
    %v228 = vld [vmem:[#allocation2 + $0x5c0] sm:$0xff]
    %v229 = vld [vmem:[#allocation2 + $0x5c8] sm:$0xff]
    %v230 = vld [vmem:[#allocation2 + $0x5d0] sm:$0xff]
    %v231 = vld [vmem:[#allocation2 + $0x5d8] sm:$0xff]
    %v232 = vld [vmem:[#allocation2 + $0x5e0] sm:$0xff]
    %v233 = vld [vmem:[#allocation2 + $0x5e8] sm:$0xff]
    %v234 = vld [vmem:[#allocation2 + $0x5f0] sm:$0xff]
    %v235 = vld [vmem:[#allocation2 + $0x5f8] sm:$0xff]
    %v236 = vld [vmem:[#allocation2 + $0x600] sm:$0xff]
    %v237 = vld [vmem:[#allocation2 + $0x608] sm:$0xff]
    %v238 = vld [vmem:[#allocation2 + $0x610] sm:$0xff]
    %v239 = vld [vmem:[#allocation2 + $0x618] sm:$0xff]
    %v240 = vld [vmem:[#allocation2 + $0x620] sm:$0xff]
    %v241 = vld [vmem:[#allocation2 + $0x628] sm:$0xff]
    %v242 = vld [vmem:[#allocation2 + $0x630] sm:$0xff]
    %v243 = vld [vmem:[#allocation2 + $0x638] sm:$0xff]
    %v244 = vld [vmem:[#allocation2 + $0x640] sm:$0xff]
    %v245 = vld [vmem:[#allocation2 + $0x648] sm:$0xff]
    %v246 = vld [vmem:[#allocation2 + $0x650] sm:$0xff]
    %v247 = vld [vmem:[#allocation2 + $0x658] sm:$0xff]
    %v248 = vld [vmem:[#allocation2 + $0x660] sm:$0xff]
    %v249 = vld [vmem:[#allocation2 + $0x668] sm:$0xff]
    %v250 = vld [vmem:[#allocation2 + $0x670] sm:$0xff]
    %v251 = vld [vmem:[#allocation2 + $0x678] sm:$0xff]
    %v252 = vld [vmem:[#allocation2 + $0x680] sm:$0xff]
    %v253 = vld [vmem:[#allocation2 + $0x688] sm:$0xff]
    %v254 = vld [vmem:[#allocation2 + $0x690] sm:$0xff]
    %v255 = vld [vmem:[#allocation2 + $0x698] sm:$0xff]
    %v256 = vld [vmem:[#allocation2 + $0x6a0] sm:$0xff]
    %v257 = vld [vmem:[#allocation2 + $0x6a8] sm:$0xff]
    %v258 = vld [vmem:[#allocation2 + $0x6b0] sm:$0xff]
    %v259 = vld [vmem:[#allocation2 + $0x6b8] sm:$0xff]
    %v260 = vld [vmem:[#allocation2 + $0x6c0] sm:$0xff]
    %v261 = vld [vmem:[#allocation2 + $0x6c8] sm:$0xff]
    %v262 = vld [vmem:[#allocation2 + $0x6d0] sm:$0xff]
    %v263 = vld [vmem:[#allocation2 + $0x6d8] sm:$0xff]
    %v264 = vld [vmem:[#allocation2 + $0x6e0] sm:$0xff]
    %v265 = vld [vmem:[#allocation2 + $0x6e8] sm:$0xff]
    %v266 = vld [vmem:[#allocation2 + $0x6f0] sm:$0xff]
    %v267 = vld [vmem:[#allocation2 + $0x6f8] sm:$0xff]
    %v268 = vld [vmem:[#allocation2 + $0x700] sm:$0xff]
    %v269 = vld [vmem:[#allocation2 + $0x708] sm:$0xff]
    %v270 = vld [vmem:[#allocation2 + $0x710] sm:$0xff]
    %v271 = vld [vmem:[#allocation2 + $0x718] sm:$0xff]
    %v272 = vld [vmem:[#allocation2 + $0x720] sm:$0xff]
    %v273 = vld [vmem:[#allocation2 + $0x728] sm:$0xff]
    %v274 = vld [vmem:[#allocation2 + $0x730] sm:$0xff]
    %v275 = vld [vmem:[#allocation2 + $0x738] sm:$0xff]
    %v276 = vld [vmem:[#allocation2 + $0x740] sm:$0xff]
    %v277 = vld [vmem:[#allocation2 + $0x748] sm:$0xff]
    %v278 = vld [vmem:[#allocation2 + $0x750] sm:$0xff]
    %v279 = vld [vmem:[#allocation2 + $0x758] sm:$0xff]
    %v280 = vld [vmem:[#allocation2 + $0x760] sm:$0xff]
    %v281 = vld [vmem:[#allocation2 + $0x768] sm:$0xff]
    %v282 = vld [vmem:[#allocation2 + $0x770] sm:$0xff]
    %v283 = vld [vmem:[#allocation2 + $0x778] sm:$0xff]
    %v284 = vld [vmem:[#allocation2 + $0x780] sm:$0xff]
    %v285 = vld [vmem:[#allocation2 + $0x788] sm:$0xff]
    %v286 = vld [vmem:[#allocation2 + $0x790] sm:$0xff]
    %v287 = vld [vmem:[#allocation2 + $0x798] sm:$0xff]
    %v288 = vld [vmem:[#allocation2 + $0x7a0] sm:$0xff]
    %v289 = vld [vmem:[#allocation2 + $0x7a8] sm:$0xff]
    %v290 = vld [vmem:[#allocation2 + $0x7b0] sm:$0xff]
    %v291 = vld [vmem:[#allocation2 + $0x7b8] sm:$0xff]
    %v292 = vld [vmem:[#allocation2 + $0x7c0] sm:$0xff]
    %v293 = vld [vmem:[#allocation2 + $0x7c8] sm:$0xff]
    %v294 = vld [vmem:[#allocation2 + $0x7d0] sm:$0xff]
    %v295 = vld [vmem:[#allocation2 + $0x7d8] sm:$0xff]
    %v296 = vld [vmem:[#allocation2 + $0x7e0] sm:$0xff]
    %v297 = vld [vmem:[#allocation2 + $0x7e8] sm:$0xff]
    %v298 = vld [vmem:[#allocation2 + $0x7f0] sm:$0xff]
    %v299 = vld [vmem:[#allocation2 + $0x7f8] sm:$0xff]
    %v300 = vld [vmem:[%s2] sm:$0x1]
    %v302 = vlaneseq
    %v303 = vshrl.u32 %v302, 7
    %v304 = vsub.s32 0, %v303
    %v305 = vrot.slane %v300, %v304
    %307 = vmatprep.subr.mxu0 0.0
    %308 = vmatpush1.msra.mxu0 %v44
    %309 = vmatprep.subr.mxu0 0.0
    %310 = vmatpush1.msra.mxu0 %v45
    %311 = vmatprep.subr.mxu0 0.0
    %312 = vmatpush1.msra.mxu0 %v46
    %313 = vmatprep.subr.mxu0 0.0
    %314 = vmatpush1.msra.mxu0 %v47
    %315 = vmatprep.subr.mxu0 0.0
    %316 = vmatpush1.msra.mxu0 %v48
    %317 = vmatprep.subr.mxu0 0.0
    %318 = vmatpush1.msra.mxu0 %v49
    %319 = vmatprep.subr.mxu0 0.0
    %320 = vmatpush1.msra.mxu0 %v50
    %321 = vmatprep.subr.mxu0 0.0
    %322 = vmatpush1.msra.mxu0 %v51
    %323 = vmatprep.subr.mxu0 0.0
    %324 = vmatpush1.msra.mxu0 %v52
    %325 = vmatprep.subr.mxu0 0.0
    %326 = vmatpush1.msra.mxu0 %v53
    %327 = vmatprep.subr.mxu0 0.0
    %328 = vmatpush1.msra.mxu0 %v54
    %329 = vmatprep.subr.mxu0 0.0
    %330 = vmatpush1.msra.mxu0 %v55
    %331 = vmatprep.subr.mxu0 0.0
    %332 = vmatpush1.msra.mxu0 %v56
    %333 = vmatprep.subr.mxu0 0.0
    %334 = vmatpush1.msra.mxu0 %v57
    %335 = vmatprep.subr.mxu0 0.0
    %336 = vmatpush1.msra.mxu0 %v58
    %337 = vmatprep.subr.mxu0 0.0
    %338 = vmatpush1.msra.mxu0 %v59
    %339 = vmatprep.subr.mxu0 0.0
    %340 = vmatpush1.msra.mxu0 %v60
    %341 = vmatprep.subr.mxu0 0.0
    %342 = vmatpush1.msra.mxu0 %v61
    %343 = vmatprep.subr.mxu0 0.0
    %344 = vmatpush1.msra.mxu0 %v62
    %345 = vmatprep.subr.mxu0 0.0
    %346 = vmatpush1.msra.mxu0 %v63
    %347 = vmatprep.subr.mxu0 0.0
    %348 = vmatpush1.msra.mxu0 %v64
    %349 = vmatprep.subr.mxu0 0.0
    %350 = vmatpush1.msra.mxu0 %v65
    %351 = vmatprep.subr.mxu0 0.0
    %352 = vmatpush1.msra.mxu0 %v66
    %353 = vmatprep.subr.mxu0 0.0
    %354 = vmatpush1.msra.mxu0 %v67
    %355 = vmatprep.subr.mxu0 0.0
    %356 = vmatpush1.msra.mxu0 %v68
    %357 = vmatprep.subr.mxu0 0.0
    %358 = vmatpush1.msra.mxu0 %v69
    %359 = vmatprep.subr.mxu0 0.0
    %360 = vmatpush1.msra.mxu0 %v70
    %361 = vmatprep.subr.mxu0 0.0
    %362 = vmatpush1.msra.mxu0 %v71
    %363 = vmatprep.subr.mxu0 0.0
    %364 = vmatpush1.msra.mxu0 %v72
    %365 = vmatprep.subr.mxu0 0.0
    %366 = vmatpush1.msra.mxu0 %v73
    %367 = vmatprep.subr.mxu0 0.0
    %368 = vmatpush1.msra.mxu0 %v74
    %369 = vmatprep.subr.mxu0 0.0
    %370 = vmatpush1.msra.mxu0 %v75
    %371 = vmatprep.mubr.f32.mxu0 %v29
    %372 = vmatmul.mubr.f32.gmra.mrb[0].mxu0 %v28
    %v373 = vpop.f32.mrb[0].mxu0
    %v374 = vadd.f32 %v305, %v373
    %v375 = vpop.f32.mrb[0].mxu0
    %376 = vdwg.mxu0
    %377 = vmatprep.subr.mxu0 0.0
    %378 = vmatpush1.msra.mxu0 %v76
    %379 = vmatprep.subr.mxu0 0.0
    %380 = vmatpush1.msra.mxu0 %v77
    %381 = vmatprep.subr.mxu0 0.0
    %382 = vmatpush1.msra.mxu0 %v78
    %383 = vmatprep.subr.mxu0 0.0
    %384 = vmatpush1.msra.mxu0 %v79
    %385 = vmatprep.subr.mxu0 0.0
    %386 = vmatpush1.msra.mxu0 %v80
    %387 = vmatprep.subr.mxu0 0.0
    %388 = vmatpush1.msra.mxu0 %v81
    %389 = vmatprep.subr.mxu0 0.0
    %390 = vmatpush1.msra.mxu0 %v82
    %391 = vmatprep.subr.mxu0 0.0
    %392 = vmatpush1.msra.mxu0 %v83
    %393 = vmatprep.subr.mxu0 0.0
    %394 = vmatpush1.msra.mxu0 %v84
    %395 = vmatprep.subr.mxu0 0.0
    %396 = vmatpush1.msra.mxu0 %v85
    %397 = vmatprep.subr.mxu0 0.0
    %398 = vmatpush1.msra.mxu0 %v86
    %399 = vmatprep.subr.mxu0 0.0
    %400 = vmatpush1.msra.mxu0 %v87
    %401 = vmatprep.subr.mxu0 0.0
    %402 = vmatpush1.msra.mxu0 %v88
    %403 = vmatprep.subr.mxu0 0.0
    %404 = vmatpush1.msra.mxu0 %v89
    %405 = vmatprep.subr.mxu0 0.0
    %406 = vmatpush1.msra.mxu0 %v90
    %407 = vmatprep.subr.mxu0 0.0
    %408 = vmatpush1.msra.mxu0 %v91
    %409 = vmatprep.subr.mxu0 0.0
    %410 = vmatpush1.msra.mxu0 %v92
    %411 = vmatprep.subr.mxu0 0.0
    %412 = vmatpush1.msra.mxu0 %v93
    %413 = vmatprep.subr.mxu0 0.0
    %414 = vmatpush1.msra.mxu0 %v94
    %415 = vmatprep.subr.mxu0 0.0
    %416 = vmatpush1.msra.mxu0 %v95
    %417 = vmatprep.subr.mxu0 0.0
    %418 = vmatpush1.msra.mxu0 %v96
    %419 = vmatprep.subr.mxu0 0.0
    %420 = vmatpush1.msra.mxu0 %v97
    %421 = vmatprep.subr.mxu0 0.0
    %422 = vmatpush1.msra.mxu0 %v98
    %423 = vmatprep.subr.mxu0 0.0
    %424 = vmatpush1.msra.mxu0 %v99
    %425 = vmatprep.subr.mxu0 0.0
    %426 = vmatpush1.msra.mxu0 %v100
    %427 = vmatprep.subr.mxu0 0.0
    %428 = vmatpush1.msra.mxu0 %v101
    %429 = vmatprep.subr.mxu0 0.0
    %430 = vmatpush1.msra.mxu0 %v102
    %431 = vmatprep.subr.mxu0 0.0
    %432 = vmatpush1.msra.mxu0 %v103
    %433 = vmatprep.subr.mxu0 0.0
    %434 = vmatpush1.msra.mxu0 %v104
    %435 = vmatprep.subr.mxu0 0.0
    %436 = vmatpush1.msra.mxu0 %v105
    %437 = vmatprep.subr.mxu0 0.0
    %438 = vmatpush1.msra.mxu0 %v106
    %439 = vmatprep.subr.mxu0 0.0
    %440 = vmatpush1.msra.mxu0 %v107
    %441 = vmatprep.mubr.f32.mxu0 %v31
    %442 = vmatmul.mubr.f32.gmra.mrb[0].mxu0 %v30
    %v443 = vpop.f32.mrb[0].mxu0
    %v444 = vadd.f32 %v374, %v443
    %v445 = vpop.f32.mrb[0].mxu0
    %446 = vdwg.mxu0
    %447 = vmatprep.subr.mxu0 0.0
    %448 = vmatpush1.msra.mxu0 %v108
    %449 = vmatprep.subr.mxu0 0.0
    %450 = vmatpush1.msra.mxu0 %v109
    %451 = vmatprep.subr.mxu0 0.0
    %452 = vmatpush1.msra.mxu0 %v110
    %453 = vmatprep.subr.mxu0 0.0
    %454 = vmatpush1.msra.mxu0 %v111
    %455 = vmatprep.subr.mxu0 0.0
    %456 = vmatpush1.msra.mxu0 %v112
    %457 = vmatprep.subr.mxu0 0.0
    %458 = vmatpush1.msra.mxu0 %v113
    %459 = vmatprep.subr.mxu0 0.0
    %460 = vmatpush1.msra.mxu0 %v114
    %461 = vmatprep.subr.mxu0 0.0
    %462 = vmatpush1.msra.mxu0 %v115
    %463 = vmatprep.subr.mxu0 0.0
    %464 = vmatpush1.msra.mxu0 %v116
    %465 = vmatprep.subr.mxu0 0.0
    %466 = vmatpush1.msra.mxu0 %v117
    %467 = vmatprep.subr.mxu0 0.0
    %468 = vmatpush1.msra.mxu0 %v118
    %469 = vmatprep.subr.mxu0 0.0
    %470 = vmatpush1.msra.mxu0 %v119
    %471 = vmatprep.subr.mxu0 0.0
    %472 = vmatpush1.msra.mxu0 %v120
    %473 = vmatprep.subr.mxu0 0.0
    %474 = vmatpush1.msra.mxu0 %v121
    %475 = vmatprep.subr.mxu0 0.0
    %476 = vmatpush1.msra.mxu0 %v122
    %477 = vmatprep.subr.mxu0 0.0
    %478 = vmatpush1.msra.mxu0 %v123
    %479 = vmatprep.subr.mxu0 0.0
    %480 = vmatpush1.msra.mxu0 %v124
    %481 = vmatprep.subr.mxu0 0.0
    %482 = vmatpush1.msra.mxu0 %v125
    %483 = vmatprep.subr.mxu0 0.0
    %484 = vmatpush1.msra.mxu0 %v126
    %485 = vmatprep.subr.mxu0 0.0
    %486 = vmatpush1.msra.mxu0 %v127
    %487 = vmatprep.subr.mxu0 0.0
    %488 = vmatpush1.msra.mxu0 %v128
    %489 = vmatprep.subr.mxu0 0.0
    %490 = vmatpush1.msra.mxu0 %v129
    %491 = vmatprep.subr.mxu0 0.0
    %492 = vmatpush1.msra.mxu0 %v130
    %493 = vmatprep.subr.mxu0 0.0
    %494 = vmatpush1.msra.mxu0 %v131
    %495 = vmatprep.subr.mxu0 0.0
    %496 = vmatpush1.msra.mxu0 %v132
    %497 = vmatprep.subr.mxu0 0.0
    %498 = vmatpush1.msra.mxu0 %v133
    %499 = vmatprep.subr.mxu0 0.0
    %500 = vmatpush1.msra.mxu0 %v134
    %501 = vmatprep.subr.mxu0 0.0
    %502 = vmatpush1.msra.mxu0 %v135
    %503 = vmatprep.subr.mxu0 0.0
    %504 = vmatpush1.msra.mxu0 %v136
    %505 = vmatprep.subr.mxu0 0.0
    %506 = vmatpush1.msra.mxu0 %v137
    %507 = vmatprep.subr.mxu0 0.0
    %508 = vmatpush1.msra.mxu0 %v138
    %509 = vmatprep.subr.mxu0 0.0
    %510 = vmatpush1.msra.mxu0 %v139
    %511 = vmatprep.mubr.f32.mxu0 %v33
    %512 = vmatmul.mubr.f32.gmra.mrb[0].mxu0 %v32
    %v513 = vpop.f32.mrb[0].mxu0
    %v514 = vadd.f32 %v444, %v513
    %v515 = vpop.f32.mrb[0].mxu0
    %516 = vdwg.mxu0
    %517 = vmatprep.subr.mxu0 0.0
    %518 = vmatpush1.msra.mxu0 %v140
    %519 = vmatprep.subr.mxu0 0.0
    %520 = vmatpush1.msra.mxu0 %v141
    %521 = vmatprep.subr.mxu0 0.0
    %522 = vmatpush1.msra.mxu0 %v142
    %523 = vmatprep.subr.mxu0 0.0
    %524 = vmatpush1.msra.mxu0 %v143
    %525 = vmatprep.subr.mxu0 0.0
    %526 = vmatpush1.msra.mxu0 %v144
    %527 = vmatprep.subr.mxu0 0.0
    %528 = vmatpush1.msra.mxu0 %v145
    %529 = vmatprep.subr.mxu0 0.0
    %530 = vmatpush1.msra.mxu0 %v146
    %531 = vmatprep.subr.mxu0 0.0
    %532 = vmatpush1.msra.mxu0 %v147
    %533 = vmatprep.subr.mxu0 0.0
    %534 = vmatpush1.msra.mxu0 %v148
    %535 = vmatprep.subr.mxu0 0.0
    %536 = vmatpush1.msra.mxu0 %v149
    %537 = vmatprep.subr.mxu0 0.0
    %538 = vmatpush1.msra.mxu0 %v150
    %539 = vmatprep.subr.mxu0 0.0
    %540 = vmatpush1.msra.mxu0 %v151
    %541 = vmatprep.subr.mxu0 0.0
    %542 = vmatpush1.msra.mxu0 %v152
    %543 = vmatprep.subr.mxu0 0.0
    %544 = vmatpush1.msra.mxu0 %v153
    %545 = vmatprep.subr.mxu0 0.0
    %546 = vmatpush1.msra.mxu0 %v154
    %547 = vmatprep.subr.mxu0 0.0
    %548 = vmatpush1.msra.mxu0 %v155
    %549 = vmatprep.subr.mxu0 0.0
    %550 = vmatpush1.msra.mxu0 %v156
    %551 = vmatprep.subr.mxu0 0.0
    %552 = vmatpush1.msra.mxu0 %v157
    %553 = vmatprep.subr.mxu0 0.0
    %554 = vmatpush1.msra.mxu0 %v158
    %555 = vmatprep.subr.mxu0 0.0
    %556 = vmatpush1.msra.mxu0 %v159
    %557 = vmatprep.subr.mxu0 0.0
    %558 = vmatpush1.msra.mxu0 %v160
    %559 = vmatprep.subr.mxu0 0.0
    %560 = vmatpush1.msra.mxu0 %v161
    %561 = vmatprep.subr.mxu0 0.0
    %562 = vmatpush1.msra.mxu0 %v162
    %563 = vmatprep.subr.mxu0 0.0
    %564 = vmatpush1.msra.mxu0 %v163
    %565 = vmatprep.subr.mxu0 0.0
    %566 = vmatpush1.msra.mxu0 %v164
    %567 = vmatprep.subr.mxu0 0.0
    %568 = vmatpush1.msra.mxu0 %v165
    %569 = vmatprep.subr.mxu0 0.0
    %570 = vmatpush1.msra.mxu0 %v166
    %571 = vmatprep.subr.mxu0 0.0
    %572 = vmatpush1.msra.mxu0 %v167
    %573 = vmatprep.subr.mxu0 0.0
    %574 = vmatpush1.msra.mxu0 %v168
    %575 = vmatprep.subr.mxu0 0.0
    %576 = vmatpush1.msra.mxu0 %v169
    %577 = vmatprep.subr.mxu0 0.0
    %578 = vmatpush1.msra.mxu0 %v170
    %579 = vmatprep.subr.mxu0 0.0
    %580 = vmatpush1.msra.mxu0 %v171
    %581 = vmatprep.mubr.f32.mxu0 %v35
    %582 = vmatmul.mubr.f32.gmra.mrb[0].mxu0 %v34
    %v583 = vpop.f32.mrb[0].mxu0
    %v584 = vadd.f32 %v514, %v583
    %v585 = vpop.f32.mrb[0].mxu0
    %586 = vdwg.mxu0
    %587 = vmatprep.subr.mxu0 0.0
    %588 = vmatpush1.msra.mxu0 %v172
    %589 = vmatprep.subr.mxu0 0.0
    %590 = vmatpush1.msra.mxu0 %v173
    %591 = vmatprep.subr.mxu0 0.0
    %592 = vmatpush1.msra.mxu0 %v174
    %593 = vmatprep.subr.mxu0 0.0
    %594 = vmatpush1.msra.mxu0 %v175
    %595 = vmatprep.subr.mxu0 0.0
    %596 = vmatpush1.msra.mxu0 %v176
    %597 = vmatprep.subr.mxu0 0.0
    %598 = vmatpush1.msra.mxu0 %v177
    %599 = vmatprep.subr.mxu0 0.0
    %600 = vmatpush1.msra.mxu0 %v178
    %601 = vmatprep.subr.mxu0 0.0
    %602 = vmatpush1.msra.mxu0 %v179
    %603 = vmatprep.subr.mxu0 0.0
    %604 = vmatpush1.msra.mxu0 %v180
    %605 = vmatprep.subr.mxu0 0.0
    %606 = vmatpush1.msra.mxu0 %v181
    %607 = vmatprep.subr.mxu0 0.0
    %608 = vmatpush1.msra.mxu0 %v182
    %609 = vmatprep.subr.mxu0 0.0
    %610 = vmatpush1.msra.mxu0 %v183
    %611 = vmatprep.subr.mxu0 0.0
    %612 = vmatpush1.msra.mxu0 %v184
    %613 = vmatprep.subr.mxu0 0.0
    %614 = vmatpush1.msra.mxu0 %v185
    %615 = vmatprep.subr.mxu0 0.0
    %616 = vmatpush1.msra.mxu0 %v186
    %617 = vmatprep.subr.mxu0 0.0
    %618 = vmatpush1.msra.mxu0 %v187
    %619 = vmatprep.subr.mxu0 0.0
    %620 = vmatpush1.msra.mxu0 %v188
    %621 = vmatprep.subr.mxu0 0.0
    %622 = vmatpush1.msra.mxu0 %v189
    %623 = vmatprep.subr.mxu0 0.0
    %624 = vmatpush1.msra.mxu0 %v190
    %625 = vmatprep.subr.mxu0 0.0
    %626 = vmatpush1.msra.mxu0 %v191
    %627 = vmatprep.subr.mxu0 0.0
    %628 = vmatpush1.msra.mxu0 %v192
    %629 = vmatprep.subr.mxu0 0.0
    %630 = vmatpush1.msra.mxu0 %v193
    %631 = vmatprep.subr.mxu0 0.0
    %632 = vmatpush1.msra.mxu0 %v194
    %633 = vmatprep.subr.mxu0 0.0
    %634 = vmatpush1.msra.mxu0 %v195
    %635 = vmatprep.subr.mxu0 0.0
    %636 = vmatpush1.msra.mxu0 %v196
    %637 = vmatprep.subr.mxu0 0.0
    %638 = vmatpush1.msra.mxu0 %v197
    %639 = vmatprep.subr.mxu0 0.0
    %640 = vmatpush1.msra.mxu0 %v198
    %641 = vmatprep.subr.mxu0 0.0
    %642 = vmatpush1.msra.mxu0 %v199
    %643 = vmatprep.subr.mxu0 0.0
    %644 = vmatpush1.msra.mxu0 %v200
    %645 = vmatprep.subr.mxu0 0.0
    %646 = vmatpush1.msra.mxu0 %v201
    %647 = vmatprep.subr.mxu0 0.0
    %648 = vmatpush1.msra.mxu0 %v202
    %649 = vmatprep.subr.mxu0 0.0
    %650 = vmatpush1.msra.mxu0 %v203
    %651 = vmatprep.mubr.f32.mxu0 %v37
    %652 = vmatmul.mubr.f32.gmra.mrb[0].mxu0 %v36
    %v653 = vpop.f32.mrb[0].mxu0
    %v654 = vadd.f32 %v584, %v653
    %v655 = vpop.f32.mrb[0].mxu0
    %656 = vdwg.mxu0
    %657 = vmatprep.subr.mxu0 0.0
    %658 = vmatpush1.msra.mxu0 %v204
    %659 = vmatprep.subr.mxu0 0.0
    %660 = vmatpush1.msra.mxu0 %v205
    %661 = vmatprep.subr.mxu0 0.0
    %662 = vmatpush1.msra.mxu0 %v206
    %663 = vmatprep.subr.mxu0 0.0
    %664 = vmatpush1.msra.mxu0 %v207
    %665 = vmatprep.subr.mxu0 0.0
    %666 = vmatpush1.msra.mxu0 %v208
    %667 = vmatprep.subr.mxu0 0.0
    %668 = vmatpush1.msra.mxu0 %v209
    %669 = vmatprep.subr.mxu0 0.0
    %670 = vmatpush1.msra.mxu0 %v210
    %671 = vmatprep.subr.mxu0 0.0
    %672 = vmatpush1.msra.mxu0 %v211
    %673 = vmatprep.subr.mxu0 0.0
    %674 = vmatpush1.msra.mxu0 %v212
    %675 = vmatprep.subr.mxu0 0.0
    %676 = vmatpush1.msra.mxu0 %v213
    %677 = vmatprep.subr.mxu0 0.0
    %678 = vmatpush1.msra.mxu0 %v214
    %679 = vmatprep.subr.mxu0 0.0
    %680 = vmatpush1.msra.mxu0 %v215
    %681 = vmatprep.subr.mxu0 0.0
    %682 = vmatpush1.msra.mxu0 %v216
    %683 = vmatprep.subr.mxu0 0.0
    %684 = vmatpush1.msra.mxu0 %v217
    %685 = vmatprep.subr.mxu0 0.0
    %686 = vmatpush1.msra.mxu0 %v218
    %687 = vmatprep.subr.mxu0 0.0
    %688 = vmatpush1.msra.mxu0 %v219
    %689 = vmatprep.subr.mxu0 0.0
    %690 = vmatpush1.msra.mxu0 %v220
    %691 = vmatprep.subr.mxu0 0.0
    %692 = vmatpush1.msra.mxu0 %v221
    %693 = vmatprep.subr.mxu0 0.0
    %694 = vmatpush1.msra.mxu0 %v222
    %695 = vmatprep.subr.mxu0 0.0
    %696 = vmatpush1.msra.mxu0 %v223
    %697 = vmatprep.subr.mxu0 0.0
    %698 = vmatpush1.msra.mxu0 %v224
    %699 = vmatprep.subr.mxu0 0.0
    %700 = vmatpush1.msra.mxu0 %v225
    %701 = vmatprep.subr.mxu0 0.0
    %702 = vmatpush1.msra.mxu0 %v226
    %703 = vmatprep.subr.mxu0 0.0
    %704 = vmatpush1.msra.mxu0 %v227
    %705 = vmatprep.subr.mxu0 0.0
    %706 = vmatpush1.msra.mxu0 %v228
    %707 = vmatprep.subr.mxu0 0.0
    %708 = vmatpush1.msra.mxu0 %v229
    %709 = vmatprep.subr.mxu0 0.0
    %710 = vmatpush1.msra.mxu0 %v230
    %711 = vmatprep.subr.mxu0 0.0
    %712 = vmatpush1.msra.mxu0 %v231
    %713 = vmatprep.subr.mxu0 0.0
    %714 = vmatpush1.msra.mxu0 %v232
    %715 = vmatprep.subr.mxu0 0.0
    %716 = vmatpush1.msra.mxu0 %v233
    %717 = vmatprep.subr.mxu0 0.0
    %718 = vmatpush1.msra.mxu0 %v234
    %719 = vmatprep.subr.mxu0 0.0
    %720 = vmatpush1.msra.mxu0 %v235
    %721 = vmatprep.mubr.f32.mxu0 %v39
    %722 = vmatmul.mubr.f32.gmra.mrb[0].mxu0 %v38
    %v723 = vpop.f32.mrb[0].mxu0
    %v724 = vadd.f32 %v654, %v723
    %v725 = vpop.f32.mrb[0].mxu0
    %726 = vdwg.mxu0
    %727 = vmatprep.subr.mxu0 0.0
    %728 = vmatpush1.msra.mxu0 %v236
    %729 = vmatprep.subr.mxu0 0.0
    %730 = vmatpush1.msra.mxu0 %v237
    %731 = vmatprep.subr.mxu0 0.0
    %732 = vmatpush1.msra.mxu0 %v238
    %733 = vmatprep.subr.mxu0 0.0
    %734 = vmatpush1.msra.mxu0 %v239
    %735 = vmatprep.subr.mxu0 0.0
    %736 = vmatpush1.msra.mxu0 %v240
    %737 = vmatprep.subr.mxu0 0.0
    %738 = vmatpush1.msra.mxu0 %v241
    %739 = vmatprep.subr.mxu0 0.0
    %740 = vmatpush1.msra.mxu0 %v242
    %741 = vmatprep.subr.mxu0 0.0
    %742 = vmatpush1.msra.mxu0 %v243
    %743 = vmatprep.subr.mxu0 0.0
    %744 = vmatpush1.msra.mxu0 %v244
    %745 = vmatprep.subr.mxu0 0.0
    %746 = vmatpush1.msra.mxu0 %v245
    %747 = vmatprep.subr.mxu0 0.0
    %748 = vmatpush1.msra.mxu0 %v246
    %749 = vmatprep.subr.mxu0 0.0
    %750 = vmatpush1.msra.mxu0 %v247
    %751 = vmatprep.subr.mxu0 0.0
    %752 = vmatpush1.msra.mxu0 %v248
    %753 = vmatprep.subr.mxu0 0.0
    %754 = vmatpush1.msra.mxu0 %v249
    %755 = vmatprep.subr.mxu0 0.0
    %756 = vmatpush1.msra.mxu0 %v250
    %757 = vmatprep.subr.mxu0 0.0
    %758 = vmatpush1.msra.mxu0 %v251
    %759 = vmatprep.subr.mxu0 0.0
    %760 = vmatpush1.msra.mxu0 %v252
    %761 = vmatprep.subr.mxu0 0.0
    %762 = vmatpush1.msra.mxu0 %v253
    %763 = vmatprep.subr.mxu0 0.0
    %764 = vmatpush1.msra.mxu0 %v254
    %765 = vmatprep.subr.mxu0 0.0
    %766 = vmatpush1.msra.mxu0 %v255
    %767 = vmatprep.subr.mxu0 0.0
    %768 = vmatpush1.msra.mxu0 %v256
    %769 = vmatprep.subr.mxu0 0.0
    %770 = vmatpush1.msra.mxu0 %v257
    %771 = vmatprep.subr.mxu0 0.0
    %772 = vmatpush1.msra.mxu0 %v258
    %773 = vmatprep.subr.mxu0 0.0
    %774 = vmatpush1.msra.mxu0 %v259
    %775 = vmatprep.subr.mxu0 0.0
    %776 = vmatpush1.msra.mxu0 %v260
    %777 = vmatprep.subr.mxu0 0.0
    %778 = vmatpush1.msra.mxu0 %v261
    %779 = vmatprep.subr.mxu0 0.0
    %780 = vmatpush1.msra.mxu0 %v262
    %781 = vmatprep.subr.mxu0 0.0
    %782 = vmatpush1.msra.mxu0 %v263
    %783 = vmatprep.subr.mxu0 0.0
    %784 = vmatpush1.msra.mxu0 %v264
    %785 = vmatprep.subr.mxu0 0.0
    %786 = vmatpush1.msra.mxu0 %v265
    %787 = vmatprep.subr.mxu0 0.0
    %788 = vmatpush1.msra.mxu0 %v266
    %789 = vmatprep.subr.mxu0 0.0
    %790 = vmatpush1.msra.mxu0 %v267
    %791 = vmatprep.mubr.f32.mxu0 %v41
    %792 = vmatmul.mubr.f32.gmra.mrb[0].mxu0 %v40
    %v793 = vpop.f32.mrb[0].mxu0
    %v794 = vadd.f32 %v724, %v793
    %v795 = vpop.f32.mrb[0].mxu0
    %796 = vdwg.mxu0
    %797 = vmatprep.subr.mxu0 0.0
    %798 = vmatpush1.msra.mxu0 %v268
    %799 = vmatprep.subr.mxu0 0.0
    %800 = vmatpush1.msra.mxu0 %v269
    %801 = vmatprep.subr.mxu0 0.0
    %802 = vmatpush1.msra.mxu0 %v270
    %803 = vmatprep.subr.mxu0 0.0
    %804 = vmatpush1.msra.mxu0 %v271
    %805 = vmatprep.subr.mxu0 0.0
    %806 = vmatpush1.msra.mxu0 %v272
    %807 = vmatprep.subr.mxu0 0.0
    %808 = vmatpush1.msra.mxu0 %v273
    %809 = vmatprep.subr.mxu0 0.0
    %810 = vmatpush1.msra.mxu0 %v274
    %811 = vmatprep.subr.mxu0 0.0
    %812 = vmatpush1.msra.mxu0 %v275
    %813 = vmatprep.subr.mxu0 0.0
    %814 = vmatpush1.msra.mxu0 %v276
    %815 = vmatprep.subr.mxu0 0.0
    %816 = vmatpush1.msra.mxu0 %v277
    %817 = vmatprep.subr.mxu0 0.0
    %818 = vmatpush1.msra.mxu0 %v278
    %819 = vmatprep.subr.mxu0 0.0
    %820 = vmatpush1.msra.mxu0 %v279
    %821 = vmatprep.subr.mxu0 0.0
    %822 = vmatpush1.msra.mxu0 %v280
    %823 = vmatprep.subr.mxu0 0.0
    %824 = vmatpush1.msra.mxu0 %v281
    %825 = vmatprep.subr.mxu0 0.0
    %826 = vmatpush1.msra.mxu0 %v282
    %827 = vmatprep.subr.mxu0 0.0
    %828 = vmatpush1.msra.mxu0 %v283
    %829 = vmatprep.subr.mxu0 0.0
    %830 = vmatpush1.msra.mxu0 %v284
    %831 = vmatprep.subr.mxu0 0.0
    %832 = vmatpush1.msra.mxu0 %v285
    %833 = vmatprep.subr.mxu0 0.0
    %834 = vmatpush1.msra.mxu0 %v286
    %835 = vmatprep.subr.mxu0 0.0
    %836 = vmatpush1.msra.mxu0 %v287
    %837 = vmatprep.subr.mxu0 0.0
    %838 = vmatpush1.msra.mxu0 %v288
    %839 = vmatprep.subr.mxu0 0.0
    %840 = vmatpush1.msra.mxu0 %v289
    %841 = vmatprep.subr.mxu0 0.0
    %842 = vmatpush1.msra.mxu0 %v290
    %843 = vmatprep.subr.mxu0 0.0
    %844 = vmatpush1.msra.mxu0 %v291
    %845 = vmatprep.subr.mxu0 0.0
    %846 = vmatpush1.msra.mxu0 %v292
    %847 = vmatprep.subr.mxu0 0.0
    %848 = vmatpush1.msra.mxu0 %v293
    %849 = vmatprep.subr.mxu0 0.0
    %850 = vmatpush1.msra.mxu0 %v294
    %851 = vmatprep.subr.mxu0 0.0
    %852 = vmatpush1.msra.mxu0 %v295
    %853 = vmatprep.subr.mxu0 0.0
    %854 = vmatpush1.msra.mxu0 %v296
    %855 = vmatprep.subr.mxu0 0.0
    %856 = vmatpush1.msra.mxu0 %v297
    %857 = vmatprep.subr.mxu0 0.0
    %858 = vmatpush1.msra.mxu0 %v298
    %859 = vmatprep.subr.mxu0 0.0
    %860 = vmatpush1.msra.mxu0 %v299
    %861 = vmatprep.mubr.f32.mxu0 %v43
    %862 = vmatmul.mubr.f32.gmra.mrb[0].mxu0 %v42
    %v863 = vpop.f32.mrb[0].mxu0
    %v864 = vadd.f32 %v794, %v863
    %v865 = vpop.f32.mrb[0].mxu0
    %866 = vdwg.mxu0
    %867 = vst [vmem:[%s3] sm:$0xff] %v864
    // Predicated region
    $region18: #{linear_classifier_fwd.1} parent=1 // pred_check
      _
    $region19: #{linear_classifier_fwd.1} parent=1 // pred_check_branch
      %869 = sbr.rel (0) target = $region21
    $region20: #{linear_classifier_fwd.1} parent=1 // pred_region
      _
    $region21: #{linear_classifier_fwd.1} parent=1 // pred_fallthru
      _
    // Predicated region
    $region22: #{linear_classifier_fwd.1} parent=1 // pred_check
      _
    $region23: #{linear_classifier_fwd.1} parent=1 // pred_check_branch
      %871 = sbr.rel (0) target = $region25
    $region24: #{linear_classifier_fwd.1} parent=1 // pred_region
      _
    $region25: #{linear_classifier_fwd.1} parent=1 // pred_fallthru
      _
    %872 = vsyncpa [#allocation3], 1

</llo_original>
